<compile_context>
chip_gen: v7x
topology: tpu7x:2x2x1
jax: 0.10.0
libtpu: 0.0.40
codegen_flags: <defaults>
</compile_context>

<pallas_src>
import math

import jax
import jax.numpy as jnp
from jax.experimental import pallas as pl
from jax.experimental.pallas import tpu as pltpu


def make_pe_table(d_model: int, max_len: int = 1001, dtype=jnp.float32) -> jnp.ndarray:
    """Deterministic sinusoidal positional-encoding table, shape (max_len, d_model)."""
    position = jnp.arange(0, max_len, dtype=jnp.float32)[:, None]             # (max_len, 1)
    div_term = jnp.exp(
        jnp.arange(0, d_model, 2, dtype=jnp.float32) * (-math.log(10000.0) / d_model)
    )                                                                          # (d_model/2,)
    angles = position * div_term                                               # (max_len, d_model/2)
    pe = jnp.zeros((max_len, d_model), dtype=jnp.float32)
    pe = pe.at[:, 0::2].set(jnp.sin(angles))
    pe = pe.at[:, 1::2].set(jnp.cos(angles))
    return pe.astype(dtype)


def _add_pe_kernel(x_ref, pe_ref, o_ref):
    # Pure 2-D VPU add on (TR, LANE) tiles — no broadcast, no reshape in-kernel.
    o_ref[...] = (x_ref[...] + pe_ref[...]).astype(o_ref.dtype)


def _round_up(a: int, b: int) -> int:
    return (a + b - 1) // b * b


_BLOCK_BYTES = 4 << 20          # ~4 MiB / block: 6 buffers (2x x, 2x out, 2x pe) ~= 24 MiB
_VMEM_LIMIT_BYTES = 32 << 20    # covers the above on v5e/v6e/v7x
_XLA_FALLBACK_BYTES = 1 << 20   # below this, pallas_call launch overhead dominates


def positional_encoding(x: jnp.ndarray, pe: jnp.ndarray, *, force_pallas: bool = False) -> jnp.ndarray:
    """x: (B, L, D); pe: (max_len, d_model). Returns x + pe[:L] broadcast over batch."""
    B, L, D = x.shape
    dtype = x.dtype
    itemsize = jnp.dtype(dtype).itemsize

    # Non-float activations: keep pe in float (casting the sinusoid table to an int
    # dtype would truncate it to {-1,0,1}); let XLA handle the promoted add.
    if not jnp.issubdtype(dtype, jnp.floating):
        return x + pe[:L, :][None, :, :]

    # Tiny tensors: a fused XLA elementwise add beats kernel launch + pipeline setup.
    if (B * L * D * itemsize) < _XLA_FALLBACK_BYTES and not force_pallas:
        return x + pe[:L, :].astype(dtype)[None, :, :]

    # No-op when the table was already built in the activation dtype (normal path).
    pe_slice = pe[:L, :].astype(dtype)                      # (L, D)

    sub = {4: 8, 2: 16, 1: 32}.get(itemsize, 8)             # sublane quantum per dtype
    N = L * D

    # ---- layout selection: no padding by construction ------------------------------
    lane = 0
    for cand in (2048, 1024, 512, 256, 128):                # largest 128-multiple dividing N
        if N % cand == 0:
            lane = cand
            break

    if lane:
        # Flat lane-dense layout: (B, L, D) -> (B, rows, lane) is a free bitcast.
        rows = N // lane
        max_rows = max(sub, (_BLOCK_BYTES // (lane * itemsize)) // sub * sub)
        tr = min(_round_up(rows, sub), max_rows)
        x_in = x.reshape(B, rows, lane)
        pe_in = pe_slice.reshape(rows, lane)
        grid = (pl.cdiv(rows, tr), B)                       # ragged tail -> masked partial block
        in_specs = [
            pl.BlockSpec((None, tr, lane), lambda r, b: (b, r, 0)),   # batch dim squeezed
            pl.BlockSpec((tr, lane), lambda r, b: (r, 0)),            # pe ignores batch axis
        ]
        out_spec = pl.BlockSpec((None, tr, lane), lambda r, b: (b, r, 0))
        out_shape = jax.ShapeDtypeStruct((B, rows, lane), dtype)
    else:
        # Ragged feature dim (L*D not a multiple of 128): keep native (B, L, D) layout.
        # Block last dim == full D (legal per the (8,128)-or-full-dim rule).
        max_rows = max(sub, (_BLOCK_BYTES // (D * itemsize)) // sub * sub)
        tr = min(_round_up(L, sub), max_rows)
        x_in = x
        pe_in = pe_slice
        grid = (pl.cdiv(L, tr), B)
        in_specs = [
            pl.BlockSpec((None, tr, D), lambda r, b: (b, r, 0)),
            pl.BlockSpec((tr, D), lambda r, b: (r, 0)),
        ]
        out_spec = pl.BlockSpec((None, tr, D), lambda r, b: (b, r, 0))
        out_shape = jax.ShapeDtypeStruct((B, L, D), dtype)

    out = pl.pallas_call(
        _add_pe_kernel,
        out_shape=out_shape,
        grid_spec=pltpu.PrefetchScalarGridSpec(
            num_scalar_prefetch=0,
            grid=grid,
            in_specs=in_specs,
            out_specs=out_spec,
        ),
        compiler_params=pltpu.CompilerParams(
            # Every (r, b) step writes a disjoint output block -> both axes parallel
            # (lets v7x's 2 TensorCores shard either axis; no effect on 1-TC chips).
            dimension_semantics=("parallel", "parallel"),
            vmem_limit_bytes=_VMEM_LIMIT_BYTES,
        ),
    )(x_in, pe_in)

    # Free bitcast back to (B, L, D) — no slicing, no padding to undo.
    return out.reshape(B, L, D)


if __name__ == "__main__":
    key = jax.random.PRNGKey(0)
    k1, k2 = jax.random.split(key)

    # Case 1: L*D divisible by 128 -> flat lane-dense kernel path.
    B, L, D = 2, 8, 32
    x = jax.random.normal(k1, (B, L, D), dtype=jnp.float32)
    pe = make_pe_table(d_model=D, max_len=1001, dtype=jnp.float32)
    out = jax.block_until_ready(positional_encoding(x, pe, force_pallas=True))
    ref = x + pe[:L, :][None, :, :]
    assert out.shape == (B, L, D)
    assert jnp.allclose(out, ref, atol=1e-6), "mismatch vs reference (flat path)"

    # Case 2: ragged feature dim -> native (B, L, D) kernel path (full-D last block dim).
    B2, L2, D2 = 2, 7, 48
    x2 = jax.random.normal(k2, (B2, L2, D2), dtype=jnp.float32)
    pe2 = make_pe_table(d_model=D2, max_len=1001, dtype=jnp.float32)
    out2 = jax.block_until_ready(positional_encoding(x2, pe2, force_pallas=True))
    ref2 = x2 + pe2[:L2, :][None, :, :]
    assert out2.shape == (B2, L2, D2)
    assert jnp.allclose(out2, ref2, atol=1e-6), "mismatch vs reference (native path)"

    # Case 3: tiny-tensor auto path -> plain XLA fallback.
    out3 = jax.block_until_ready(positional_encoding(x, pe))
    assert jnp.allclose(out3, ref, atol=1e-6), "mismatch vs reference (XLA fallback)"

    print("KERNEL_OK")
</pallas_src>

<mosaic_0001>
module attributes {stable_mosaic.version = 11 : i64} {
  func.func @_add_pe_kernel(%arg0: i32, %arg1: i32, %arg2: memref<1x8x256xf32, #tpu.memory_space<vmem>>, %arg3: memref<8x256xf32, #tpu.memory_space<vmem>>, %arg4: memref<1x8x256xf32, #tpu.memory_space<vmem>>) attributes {dimension_semantics = [#tpu.dimension_semantics<parallel>, #tpu.dimension_semantics<parallel>], iteration_bounds = array<i64: 1, 2>, scalar_prefetch = 0 : i64, scratch_operands = 0 : i64, tpu.core_type = #tpu.core_type<tc>, window_params = [{transform_indices = @transform_0, window_bounds = array<i64: 1, 8, 256>}, {transform_indices = @transform_1, window_bounds = array<i64: 8, 256>}, {transform_indices = @transform_2, window_bounds = array<i64: 1, 8, 256>}]} {
    %c0 = arith.constant 0 : index
    %c0_0 = arith.constant 0 : index
    %c0_1 = arith.constant 0 : index
    %0 = vector.load %arg2[%c0, %c0_0, %c0_1] : memref<1x8x256xf32, #tpu.memory_space<vmem>>, vector<1x8x256xf32>
    %1 = vector.shape_cast %0 : vector<1x8x256xf32> to vector<8x256xf32>
    %c0_2 = arith.constant 0 : index
    %c0_3 = arith.constant 0 : index
    %2 = vector.load %arg3[%c0_2, %c0_3] : memref<8x256xf32, #tpu.memory_space<vmem>>, vector<8x256xf32>
    %3 = arith.addf %1, %2 : vector<8x256xf32>
    %c0_4 = arith.constant 0 : index
    %c0_5 = arith.constant 0 : index
    %c0_6 = arith.constant 0 : index
    %4 = vector.load %arg4[%c0_4, %c0_5, %c0_6] : memref<1x8x256xf32, #tpu.memory_space<vmem>>, vector<1x8x256xf32>
    %5 = vector.shape_cast %4 : vector<1x8x256xf32> to vector<8x256xf32>
    %6 = vector.shape_cast %3 : vector<8x256xf32> to vector<1x8x256xf32>
    tpu.vector_store %arg4[%c0_4, %c0_5, %c0_6], %6 {strides = array<i32>} : memref<1x8x256xf32, #tpu.memory_space<vmem>>, vector<1x8x256xf32>,
    return
  }
  func.func @transform_0(%arg0: i32, %arg1: i32) -> (i32, i32, i32) {
    %c0_i32 = arith.constant 0 : i32
    %c0_i32_0 = arith.constant 0 : i32
    return %arg1, %arg0, %c0_i32 : i32, i32, i32
  }
  func.func @transform_1(%arg0: i32, %arg1: i32) -> (i32, i32) {
    %c0_i32 = arith.constant 0 : i32
    %c0_i32_0 = arith.constant 0 : i32
    return %arg0, %c0_i32 : i32, i32
  }
  func.func @transform_2(%arg0: i32, %arg1: i32) -> (i32, i32, i32) {
    %c0_i32 = arith.constant 0 : i32
    %c0_i32_0 = arith.constant 0 : i32
    return %arg1, %arg0, %c0_i32 : i32, i32, i32
  }
}

</mosaic_0001>

<llo_original>
// kernel: tpu_custom_call.1
$region0: #{tpu_custom_call.1}
  #allocation0 [shape = 'u32[]', space=smem, size = 0x4, offset = 0x4, fixed_abs, tag = 'smem constant byte address 0x4 - core index']
  #allocation1 [shape = 'u32[144,128]{1,0:T(1,128)}', space=vmem, size = 0x12000, scoped, tag = 'internal scratch']
  %s0 = inlined_call_operand.hbm [shape: f32[2,1,256], index: 0, kind: input, shape index: {}]
  %s1 = inlined_call_operand.vmem [shape: f32[1,256], index: 1, kind: input, shape index: {}]
  %s2 = inlined_call_operand.hbm [shape: f32[2,1,256], index: 2, kind: output, shape index: {}]
  %s3 = sld [smem:[#allocation0]]
  $region45: #{tpu_custom_call.1} parent=0
    _
  %s5 = ssub.s32 1, %s3
  %s6 = scalar_select 0, %s5, %s3
  $region1: #{tpu_custom_call.1} parent=0
    #allocation2 [shape = 'u8[16384]{0}', space=vmem, size = 0x4000, scoped, tag = 'input window, operand 0']
    #allocation3 [shape = 's32[2]{0}', space=sflag, size = 0x8, scoped, tag = 'scoped memory for tpu_custom_call.1']
    #allocation4 [shape = 's32[2]{0}', space=sflag, size = 0x8, scoped, tag = 'scoped memory for tpu_custom_call.1']
    #allocation5 [shape = 'u8[16384]{0}', space=vmem, size = 0x4000, scoped, tag = 'output window, operand 0']
    %7 = vsyncpa [#allocation3], 0
    %s8 = scalar_lea.sflag [#allocation3], 1
    %9 = vsyncpa %s8, 0
    %10 = vsyncpa [#allocation4], 0
    %s11 = scalar_lea.sflag [#allocation4], 1
    %12 = vsyncpa %s11, 0
    loop: start=0, step=1, limit=4
    $region2: #{tpu_custom_call.1} parent=1 // loop_pre_header
      _
    $region3: #{tpu_custom_call.1} parent=1 // loop_header
      %s14 = sphi 0, %s18
      %p15 = scmp.ge.s32.totalorder %s14, 4
      %s21 = sphi 0, %s33
      %s22 = sphi 0, %s29
      %s23 = sphi 0, %s21
      %s24 = sphi 0, %s22
      %s25 = sphi 0, %s23
      %s26 = sphi 0, %s24
      %s38 = sphi 0, %s40
      %s41 = sphi 0, %s38
      %s42 = sphi 0, %s41
      %s58 = sphi 0, %s42
      %s64 = sphi 0, %s66
      %s67 = sphi 0, %s64
      %s68 = sphi 0, %s67
      %s84 = sphi 0, %s68
      %s92 = sphi 0, %s94
      %s95 = sphi 0, %s92
      %s96 = sphi 0, %s95
      %s112 = sphi 0, %s96
    $region4: #{tpu_custom_call.1} parent=1 // loop_header_branch
      %17 = sbr.rel (%p15) target = $region8
    $region5: #{tpu_custom_call.1} parent=1 // loop_body
      %s19 = ssub.s32 %s14, 1
      %s20 = ssub.s32 %s14, 2
      %s27 = sadd.s32 1, %s22
      %p28 = scmp.ge.s32.totalorder %s27, 2
      %s29 = scalar_select %p28, 0, %s27
      %s30 = sadd.s32 1, %s21
      %s31 = scalar_select %p28, %s30, %s21
      %p32 = scmp.ge.s32.totalorder %s31, 1
      %s33 = scalar_select %p32, 0, %s31
      %s34 = ssub.s32 %s22, %s29
      %s35 = ssub.s32 %s21, %s33
      %s36 = sor.u32 %s34, %s35
      %p37 = scmp.eq.s32.totalorder %s36, 0
      %s39 = sadd.s32 %s38, 1
      %s40 = scalar_select %p37, %s38, %s39
      %p43 = pneg %p37
      %p44 = scmp.eq.s32.totalorder %s14, 1
      %p45 = por %p43, %p44
      %p46 = scmp.ne.s32.totalorder %s38, %s41
      %p47 = scmp.eq.s32.totalorder %s14, 0
      %p48 = por %p46, %p47
      %p49 = scmp.ne.s32.totalorder %s38, %s41
      %p50 = scmp.eq.s32.totalorder %s19, 1
      %p51 = por %p49, %p50
      %p52 = scmp.ne.s32.totalorder %s41, %s42
      %p53 = scmp.eq.s32.totalorder %s19, 0
      %p54 = por %p52, %p53
      %p55 = scmp.ne.s32.totalorder %s41, %s42
      %p56 = scmp.eq.s32.totalorder %s20, 1
      %p57 = por %p55, %p56
      %p59 = scmp.ne.s32.totalorder %s42, %s58
      %p60 = scmp.eq.s32.totalorder %s20, 0
      %p61 = por %p59, %p60
      %s62 = ssub.s32 %s21, %s33
      %p63 = scmp.eq.s32.totalorder %s62, 0
      %s65 = sadd.s32 %s64, 1
      %s66 = scalar_select %p63, %s64, %s65
      %p69 = pneg %p63
      %p70 = scmp.eq.s32.totalorder %s14, 1
      %p71 = por %p69, %p70
      %p72 = scmp.ne.s32.totalorder %s64, %s67
      %p73 = scmp.eq.s32.totalorder %s14, 0
      %p74 = por %p72, %p73
      %p75 = scmp.ne.s32.totalorder %s64, %s67
      %p76 = scmp.eq.s32.totalorder %s19, 1
      %p77 = por %p75, %p76
      %p78 = scmp.ne.s32.totalorder %s67, %s68
      %p79 = scmp.eq.s32.totalorder %s19, 0
      %p80 = por %p78, %p79
      %p81 = scmp.ne.s32.totalorder %s67, %s68
      %p82 = scmp.eq.s32.totalorder %s20, 1
      %p83 = por %p81, %p82
      %p85 = scmp.ne.s32.totalorder %s68, %s84
      %p86 = scmp.eq.s32.totalorder %s20, 0
      %p87 = por %p85, %p86
      %s88 = ssub.s32 %s22, %s29
      %s89 = ssub.s32 %s21, %s33
      %s90 = sor.u32 %s88, %s89
      %p91 = scmp.eq.s32.totalorder %s90, 0
      %s93 = sadd.s32 %s92, 1
      %s94 = scalar_select %p91, %s92, %s93
      %p97 = pneg %p91
      %p98 = scmp.eq.s32.totalorder %s14, 1
      %p99 = por %p97, %p98
      %p100 = scmp.ne.s32.totalorder %s92, %s95
      %p101 = scmp.eq.s32.totalorder %s14, 0
      %p102 = por %p100, %p101
      %p103 = scmp.ne.s32.totalorder %s92, %s95
      %p104 = scmp.eq.s32.totalorder %s19, 1
      %p105 = por %p103, %p104
      %p106 = scmp.ne.s32.totalorder %s95, %s96
      %p107 = scmp.eq.s32.totalorder %s19, 0
      %p108 = por %p106, %p107
      %p109 = scmp.ne.s32.totalorder %s95, %s96
      %p110 = scmp.eq.s32.totalorder %s20, 1
      %p111 = por %p109, %p110
      %p113 = scmp.ne.s32.totalorder %s96, %s112
      %p114 = scmp.eq.s32.totalorder %s20, 0
      %p115 = por %p113, %p114
      %p116 = scmp.le.s32.totalorder 1, %s14
      %p117 = scmp.lt.s32.totalorder %s14, 3
      %p118 = pnand %p116, %p117
      %p119 = pneg %p118
      // Predicated region
      $region9: #{tpu_custom_call.1} parent=5 // pred_check
        _
      $region10: #{tpu_custom_call.1} parent=5 // pred_check_branch
        %121 = sbr.rel (%p118) target = $region12
      $region11: #{tpu_custom_call.1} parent=5 // pred_region
        %s122 = ssub.s32 %s14, 1
        // Predicated region
        $region13: #{tpu_custom_call.1} parent=11 // pred_check
          %p123 = pneg %p80
        $region14: #{tpu_custom_call.1} parent=11 // pred_check_branch
          %125 = sbr.rel (%p123) target = $region16
        $region15: #{tpu_custom_call.1} parent=11 // pred_region
          %s126 = smul.u32 8, %s23
          %s127 = ssub.s32 1, %s126
          %s128 = smul.u32 16, %s127
          %s129 = smul.u32 %s128, 2
          %p130 = scmp.lt.s32.totalorder %s126, 0
          %s131 = scalar_select %p130, %s126, 0
          %s132 = smul.addr %s131, 2
          %s133 = scalar_lea.vmem %s1, %s132
          %s134 = smul.u32 8, %s23
          %s135 = ssub.s32 1, %s134
          %s136 = smul.u32 16, %s135
          %s137 = smul.u32 %s136, 2
        $region16: #{tpu_custom_call.1} parent=11 // pred_fallthru
          _
      $region12: #{tpu_custom_call.1} parent=5 // pred_fallthru
        _
      %p138 = scmp.lt.s32.totalorder %s14, 2
      // Predicated region
      $region17: #{tpu_custom_call.1} parent=5 // pred_check
        %p139 = pneg %p138
      $region18: #{tpu_custom_call.1} parent=5 // pred_check_branch
        %141 = sbr.rel (%p139) target = $region20
      $region19: #{tpu_custom_call.1} parent=5 // pred_region
        // Predicated region
        $region21: #{tpu_custom_call.1} parent=19 // pred_check
          %p142 = pneg %p48
        $region22: #{tpu_custom_call.1} parent=19 // pred_check_branch
          %144 = sbr.rel (%p142) target = $region24
        $region23: #{tpu_custom_call.1} parent=19 // pred_region
          %s145 = sand.u32 %s38, 1
          %s146 = scalar_lea.sflag [#allocation3], %s145
          %s147 = sand.u32 %s38, 1
          %s148 = smul.addr %s147, 16
          %s149 = scalar_lea.vmem [#allocation2], %s148
          %s150 = smul.u32 8, %s21
          %s151 = ssub.s32 1, %s150
          %s152 = smul.u32 16, %s151
          %s153 = smul.u32 %s152, 2
          %s155 = ssub.s32 256, %s153
          %156 = vsyncadd %s146, %s155
          %p157 = scmp.ne.s32.totalorder 0, %s153
          %s158 = smul.addr %s150, 2
          %s159 = smul.addr %s22, 2
          %s160 = sadd.s32 %s158, %s159
          %s161 = smul.addr %s160, 16
          %s162 = scalar_lea.hbm %s0, %s161
          %s163 = smul.u32 2, %s151
          %s164 = sshll.u32 %s149, 4
          %s165 = int_to_ptr.vmem [resolvable:$true] %s164
          %s166 = sshll.u32 %s163, 4
          %170 = dma.hbm_to_vmem [thread:$0]  (%p157), %s162, %s166, %s165, %s146, 32, 32, 2
        $region24: #{tpu_custom_call.1} parent=19 // pred_fallthru
          _
      $region20: #{tpu_custom_call.1} parent=5 // pred_fallthru
        _
      %p171 = scmp.le.s32.totalorder 1, %s14
      %p172 = scmp.lt.s32.totalorder %s14, 3
      %p173 = pnand %p171, %p172
      %p174 = pneg %p173
      // Predicated region
      $region25: #{tpu_custom_call.1} parent=5 // pred_check
        _
      $region26: #{tpu_custom_call.1} parent=5 // pred_check_branch
        %176 = sbr.rel (%p173) target = $region28
      $region27: #{tpu_custom_call.1} parent=5 // pred_region
        %s177 = ssub.s32 %s14, 1
        %s178 = sand.u32 %s41, 1
        %s179 = scalar_lea.sflag [#allocation3], %s178
        %s180 = sand.u32 %s41, 1
        %s181 = smul.addr %s180, 16
        %s182 = scalar_lea.vmem [#allocation2], %s181
        // Predicated region
        $region29: #{tpu_custom_call.1} parent=27 // pred_check
          %p183 = pneg %p54
        $region30: #{tpu_custom_call.1} parent=27 // pred_check_branch
          %185 = sbr.rel (%p183) target = $region32
        $region31: #{tpu_custom_call.1} parent=27 // pred_region
          %186 = dma.done %s179, 256
        $region32: #{tpu_custom_call.1} parent=27 // pred_fallthru
          _
        %s187 = sand.u32 %s41, 1
        %s188 = scalar_lea.sflag [#allocation3], %s187
        %s189 = sand.u32 %s41, 1
        %s190 = smul.addr %s189, 16
        %s191 = scalar_lea.vmem [#allocation2], %s190
        %p192 = pneg %p54
        %p193 = pneg %p51
        %s194 = smul.u32 8, %s23
        %s195 = ssub.s32 1, %s194
        %s196 = smul.u32 16, %s195
        %s197 = smul.u32 %s196, 2
        %p198 = scmp.lt.s32.totalorder %s194, 0
        %s199 = scalar_select %p198, %s194, 0
        %s200 = smul.addr %s199, 2
        %s201 = scalar_lea.vmem %s1, %s200
        %p202 = pneg %p80
        %p203 = pneg %p77
        %p204 = pneg %p108
        %p205 = pneg %p105
        %s206 = sand.u32 %s95, 1
        %s207 = scalar_lea.sflag [#allocation4], %s206
        %s208 = sand.u32 %s95, 1
        %s209 = smul.addr %s208, 16
        %s210 = scalar_lea.vmem [#allocation5], %s209
        %s211 = smul.u32 8, %s23
        %s212 = ssub.s32 1, %s211
        %s213 = smul.u32 16, %s212
        %s214 = smul.u32 %s213, 2
        %s215 = smul.u32 8, %s23
        %s216 = ssub.s32 1, %s215
        %s217 = smul.u32 16, %s216
        %s218 = smul.u32 %s217, 2
        %p219 = scmp.lt.s32.totalorder %s215, 0
        %s220 = scalar_select %p219, %s215, 0
        %s221 = smul.addr %s220, 2
        %s222 = scalar_lea.vmem %s1, %s221
        %s223 = smul.u32 8, %s23
        %s224 = ssub.s32 1, %s223
        %s225 = smul.u32 16, %s224
        %s226 = smul.u32 %s225, 2
        %s227 = smul.u32 8, %s23
        %s228 = ssub.s32 1, %s227
        %s229 = smul.u32 16, %s228
        %s230 = smul.u32 %s229, 2
        %v231 = vld [vmem:[%s182] sm:$0x3]
        %v232 = vld [vmem:[%s182 + $0x2] sm:$0x3]
        %v233 = vld [vmem:[%s182 + $0x4] sm:$0x3]
        %v234 = vld [vmem:[%s182 + $0x6] sm:$0x3]
        %v235 = vld [vmem:[%s182 + $0x8] sm:$0x3]
        %v236 = vld [vmem:[%s182 + $0xa] sm:$0x3]
        %v237 = vld [vmem:[%s182 + $0xc] sm:$0x3]
        %v238 = vld [vmem:[%s182 + $0xe] sm:$0x3]
        %v239 = vld [vmem:[%s222] sm:$0x3]
        %v240 = vld [vmem:[%s222 + $0x2] sm:$0x3]
        %v241 = vld [vmem:[%s222 + $0x4] sm:$0x3]
        %v242 = vld [vmem:[%s222 + $0x6] sm:$0x3]
        %v243 = vld [vmem:[%s222 + $0x8] sm:$0x3]
        %v244 = vld [vmem:[%s222 + $0xa] sm:$0x3]
        %v245 = vld [vmem:[%s222 + $0xc] sm:$0x3]
        %v246 = vld [vmem:[%s222 + $0xe] sm:$0x3]
        %v247 = vadd.f32 %v231, %v239
        %v248 = vadd.f32 %v232, %v240
        %v249 = vadd.f32 %v233, %v241
        %v250 = vadd.f32 %v234, %v242
        %v251 = vadd.f32 %v235, %v243
        %v252 = vadd.f32 %v236, %v244
        %v253 = vadd.f32 %v237, %v245
        %v254 = vadd.f32 %v238, %v246
        %v255 = vlaneseq
        %vm256 = vcmp.ge.s32.totalorder %v255, 0
        %vm257 = vcmp.lt.s32.totalorder %v255, 256
        %vm258 = vmand %vm256, %vm257
        %259 = vst.msk [vmem:[%s210] sm:$0x3] %vm258, %v247
        %260 = vst.msk [vmem:[%s210 + $0x2] sm:$0x3] %vm258, %v248
        %261 = vst.msk [vmem:[%s210 + $0x4] sm:$0x3] %vm258, %v249
        %262 = vst.msk [vmem:[%s210 + $0x6] sm:$0x3] %vm258, %v250
        %263 = vst.msk [vmem:[%s210 + $0x8] sm:$0x3] %vm258, %v251
        %264 = vst.msk [vmem:[%s210 + $0xa] sm:$0x3] %vm258, %v252
        %265 = vst.msk [vmem:[%s210 + $0xc] sm:$0x3] %vm258, %v253
        %266 = vst.msk [vmem:[%s210 + $0xe] sm:$0x3] %vm258, %v254
        %s267 = sand.u32 %s95, 1
        %s268 = scalar_lea.sflag [#allocation4], %s267
        %s269 = sand.u32 %s95, 1
        %s270 = smul.addr %s269, 16
        %s271 = scalar_lea.vmem [#allocation5], %s270
        // Predicated region
        $region33: #{tpu_custom_call.1} parent=27 // pred_check
          %p272 = pneg %p105
        $region34: #{tpu_custom_call.1} parent=27 // pred_check_branch
          %274 = sbr.rel (%p272) target = $region36
        $region35: #{tpu_custom_call.1} parent=27 // pred_region
          %s275 = smul.u32 8, %s23
          %s276 = ssub.s32 1, %s275
          %s277 = smul.u32 16, %s276
          %s278 = smul.u32 %s277, 2
          %s280 = ssub.s32 256, %s278
          %281 = vsyncadd %s268, %s280
          %p282 = scmp.ne.s32.totalorder 0, %s278
          %s283 = smul.addr %s275, 2
          %s284 = smul.addr %s24, 2
          %s285 = sadd.s32 %s283, %s284
          %s286 = smul.addr %s285, 16
          %s287 = scalar_lea.hbm %s2, %s286
          %s288 = smul.u32 2, %s276
          %s289 = sshll.u32 %s271, 4
          %s290 = int_to_ptr.vmem [resolvable:$true] %s289
          %s291 = sshll.u32 %s288, 4
          %295 = dma.vmem_to_hbm [thread:$0]  (%p282), %s290, %s291, %s287, %s268, 32, 32, 2
        $region36: #{tpu_custom_call.1} parent=27 // pred_fallthru
          _
      $region28: #{tpu_custom_call.1} parent=5 // pred_fallthru
        _
      %p296 = scmp.le.s32.totalorder 2, %s14
      // Predicated region
      $region37: #{tpu_custom_call.1} parent=5 // pred_check
        %p297 = pneg %p296
      $region38: #{tpu_custom_call.1} parent=5 // pred_check_branch
        %299 = sbr.rel (%p297) target = $region40
      $region39: #{tpu_custom_call.1} parent=5 // pred_region
        %s300 = ssub.s32 %s14, 2
        // Predicated region
        $region41: #{tpu_custom_call.1} parent=39 // pred_check
          %p301 = pneg %p111
        $region42: #{tpu_custom_call.1} parent=39 // pred_check_branch
          %303 = sbr.rel (%p301) target = $region44
        $region43: #{tpu_custom_call.1} parent=39 // pred_region
          %s304 = sand.u32 %s96, 1
          %s305 = scalar_lea.sflag [#allocation4], %s304
          %s306 = sand.u32 %s96, 1
          %s307 = smul.addr %s306, 16
          %s308 = scalar_lea.vmem [#allocation5], %s307
          %309 = dma.done %s305, 256
        $region44: #{tpu_custom_call.1} parent=39 // pred_fallthru
          _
      $region40: #{tpu_custom_call.1} parent=5 // pred_fallthru
        _
    $region6: #{tpu_custom_call.1} parent=1 // loop_footer
      %s18 = sadd.s32 1, %s14
    $region7: #{tpu_custom_call.1} parent=1 // loop_footer_branch
      %13 = sbr.rel target = $region3
    $region8: #{tpu_custom_call.1} parent=1 // loop_exit
      _
    %310 = vsyncpa [#allocation3], 1
    %s311 = scalar_lea.sflag [#allocation3], 1
    %312 = vsyncpa %s311, 1
    %313 = vsyncpa [#allocation4], 1
    %s314 = scalar_lea.sflag [#allocation4], 1
    %315 = vsyncpa %s314, 1

</llo_original>
